<compile_context>
chip_gen: v5e
topology: v5e:2x2
jax: 0.10.0
libtpu: 0.0.40
codegen_flags: <defaults>
</compile_context>

<pallas_src>
import functools

import jax
import jax.numpy as jnp
from jax.experimental import pallas as pl
from jax.experimental.pallas import tpu as pltpu


def _tpu_generation():
    """Best-effort (tensorcores_per_chip, vmem_capacity_bytes)."""
    vmem_cap = 128 << 20          # v5e / v6e physical VMEM
    num_cores = 1
    try:
        info = pltpu.get_tpu_info()
        vmem_cap = int(getattr(info, "vmem_capacity_bytes", vmem_cap))
    except Exception:
        pass
    try:
        kind = jax.devices()[0].device_kind.lower()
        if "v7" in kind or "7x" in kind:      # v7x: 2 TensorCores per chip
            num_cores = 2
            vmem_cap = min(vmem_cap, 64 << 20)
    except Exception:
        pass
    return num_cores, vmem_cap


def _pick_batch_block(B, T, C, H, t_out, kernel_size, stride, *,
                      num_cores, vmem_cap, max_unroll=64):
    """Batch elements per grid step + whether the VPU pooling path applies."""
    vpu_pool = (kernel_size == stride) and (T % kernel_size == 0)
    # f32 working set per batch element: double-buffered input/output tiles
    # plus the conv output and pooled intermediates.
    per_b = (2 * 4 * T * C          # x tile (double-buffered)
             + 2 * 4 * H * t_out    # output tile (double-buffered)
             + 4 * T * H            # y = conv+relu intermediate
             + 2 * 4 * t_out * H)   # pooled + pooledT
    budget = max(vmem_cap // 4, 2 << 20)       # headroom for w/b/pool_mat
    max_by_vmem = max(1, budget // per_b)
    # Give the "parallel" batch axis >= num_cores grid steps (v7x megacore);
    # keep a single step on 1-TC chips (extra steps are pure overhead).
    max_by_cores = max(1, B // num_cores)
    b_blk = int(min(B, max_unroll, max_by_vmem, max_by_cores))

    def legal(bb):
        # B must tile evenly; the flattened (bb*T, C) input block and
        # (bb*H, t_out) output block must be sublane-aligned or full-array.
        return (B % bb == 0
                and ((bb * T) % 8 == 0 or bb == B)
                and ((bb * H) % 8 == 0 or bb == B))

    while b_blk > 1 and not legal(b_blk):
        b_blk -= 1
    if not legal(b_blk):
        b_blk = B   # full-array block is always layout-legal
    return b_blk, vpu_pool


def _pool_matrix(b_blk, T, t_out, kernel_size, stride):
    """Block-diagonal (b_blk*t_out, b_blk*T) averaging matrix (grid-invariant)."""
    r = jnp.arange(b_blk * t_out)
    c = jnp.arange(b_blk * T)
    rb, rp = r // t_out, r % t_out            # batch / window index per row
    cb, ct = c // T, c % T                    # batch / time index per column
    start = rp * stride
    mask = ((rb[:, None] == cb[None, :])
            & (ct[None, :] >= start[:, None])
            & (ct[None, :] < (start + kernel_size)[:, None]))
    return mask.astype(jnp.float32) * (1.0 / kernel_size)


def _featpool_kernel(x_ref, w_ref, b_ref, *rest, b_blk, T, C, H,
                     kernel_size, t_out, vpu_pool):
    if vpu_pool:
        (o_ref,) = rest
        pool_ref = None
    else:
        pool_ref, o_ref = rest

    # ---- 1x1 Conv1d over channels + bias + ReLU, fused over (batch, time) ----
    x = x_ref[...].astype(jnp.float32)          # (b_blk*T, C)
    w = w_ref[...].astype(jnp.float32)          # (C, H)
    bias = b_ref[...].astype(jnp.float32)       # (1, H)
    if C <= 32:
        # Tiny contraction dim: C broadcast-FMAs on the VPU instead of a
        # badly under-filled MXU matmul (v6e/v7x MXUs are 256 deep in K).
        y = x[:, 0:1] * w[0:1, :]
        for c in range(1, C):
            y = y + x[:, c:c + 1] * w[c:c + 1, :]
    else:
        y = jnp.dot(x, w, preferred_element_type=jnp.float32)
    y = jnp.maximum(y + bias, 0.0)              # (b_blk*T, H)

    # ---- AvgPool1d over time, fused across the whole batch block ----
    if vpu_pool:
        # Non-overlapping windows (kernel_size == stride, T % k == 0):
        # (kernel_size - 1) VPU adds on the resident tile, then *1/k.
        y3 = y.reshape(b_blk * t_out, kernel_size, H)
        pooled = y3[:, 0, :]
        for j in range(1, kernel_size):
            pooled = pooled + y3[:, j, :]
        pooled = pooled * (1.0 / kernel_size)                 # (b_blk*t_out, H)
    else:
        # One block-diagonal matmul handles every batch element in the block.
        pooled = jnp.dot(pool_ref[...], y,
                         preferred_element_type=jnp.float32)  # (b_blk*t_out, H)

    # ---- Emit (b_blk*H, t_out): one small transpose, one combined store ----
    pooledT = pooled.T                                        # (H, b_blk*t_out)
    tiles = [pooledT[:, bb * t_out:(bb + 1) * t_out] for bb in range(b_blk)]
    out = tiles[0] if b_blk == 1 else jnp.concatenate(tiles, axis=0)
    o_ref[...] = out.astype(o_ref.dtype)                      # (b_blk*H, t_out)


def feat_avg_pool(x, w, b, *, kernel_size, stride):
    """x: (B, T, C_in); w: (C_in, H); b: (H,) or (1, H). Returns (B, H, T_out)."""
    B, T, C = x.shape
    H = w.shape[1]
    t_out = (T - kernel_size) // stride + 1
    assert t_out >= 1, "pooling window larger than sequence"

    num_cores, vmem_cap = _tpu_generation()
    b_blk, vpu_pool = _pick_batch_block(
        B, T, C, H, t_out, kernel_size, stride,
        num_cores=num_cores, vmem_cap=vmem_cap)
    grid = (B // b_blk,)

    x2 = x.reshape(B * T, C)      # flatten batch into the conv's M dimension
    b2 = b.reshape(1, H)

    in_specs = [
        pl.BlockSpec((b_blk * T, C), lambda i: (i, 0)),
        pl.BlockSpec((C, H), lambda i: (0, 0)),
        pl.BlockSpec((1, H), lambda i: (0, 0)),
    ]
    args = [x2, w, b2]
    pool_bytes = 0
    if not vpu_pool:
        pool_mat = _pool_matrix(b_blk, T, t_out, kernel_size, stride)
        in_specs.append(
            pl.BlockSpec((b_blk * t_out, b_blk * T), lambda i: (0, 0)))
        args.append(pool_mat)
        pool_bytes = 2 * 4 * (b_blk * t_out) * (b_blk * T)

    # Explicit VMEM limit (v5e's scoped default is only 16 MiB), with
    # headroom over the estimated double-buffered working set.
    est = (b_blk * (2 * 4 * T * C + 2 * 4 * H * t_out + 4 * T * H
                    + 2 * 4 * t_out * H)
           + 4 * (C * H + H) + pool_bytes)
    vmem_limit = int(min(vmem_cap * 3 // 4, max(32 << 20, 4 * est)))

    kern = functools.partial(
        _featpool_kernel, b_blk=b_blk, T=T, C=C, H=H,
        kernel_size=kernel_size, t_out=t_out, vpu_pool=vpu_pool)

    out2 = pl.pallas_call(
        kern,
        out_shape=jax.ShapeDtypeStruct((B * H, t_out), x.dtype),
        grid_spec=pltpu.PrefetchScalarGridSpec(
            num_scalar_prefetch=0,
            grid=grid,
            in_specs=in_specs,
            out_specs=pl.BlockSpec((b_blk * H, t_out), lambda i: (i, 0)),
        ),
        compiler_params=pltpu.CompilerParams(
            dimension_semantics=("parallel",),
            vmem_limit_bytes=vmem_limit),
    )(*args)

    # Layout-preserving reshape only (no transpose pass over HBM).
    return out2.reshape(B, H, t_out)


def feat_avg_pool_ref(x, w, b, *, kernel_size, stride):
    """Pure-JAX reference of the PyTorch forward."""
    y = jnp.maximum(jnp.einsum("btc,ch->bth", x, w) + b.reshape(1, 1, -1), 0.0)
    T = x.shape[1]
    t_out = (T - kernel_size) // stride + 1
    pooled = jnp.stack(
        [y[:, p * stride:p * stride + kernel_size, :].mean(axis=1)
         for p in range(t_out)],
        axis=1)                                                # (B, T_out, H)
    return jnp.transpose(pooled, (0, 2, 1))                    # (B, H, T_out)


if __name__ == "__main__":
    # Module config: input_size=4, hidden_size=32, kernel_size=2, stride=2.
    B, T, C_IN, HIDDEN = 2, 16, 4, 32
    KERNEL_SIZE, STRIDE = 2, 2

    key = jax.random.PRNGKey(0)
    kx, kw, kb = jax.random.split(key, 3)

    x = jax.random.normal(kx, (B, T, C_IN), dtype=jnp.float32)

    # PyTorch Conv1d weight has shape (hidden, input, 1); store its (C_in, H)
    # transpose for the matmul/FMA formulation of the 1x1 conv.
    w_conv = 0.1 * jax.random.normal(kw, (HIDDEN, C_IN, 1), dtype=jnp.float32)
    b_conv = 0.1 * jax.random.normal(kb, (HIDDEN,), dtype=jnp.float32)
    w_mat = jnp.transpose(w_conv[:, :, 0], (1, 0))   # (C_in, H)
    b_mat = b_conv.reshape(1, HIDDEN)                # (1, H)

    out = feat_avg_pool(x, w_mat, b_mat,
                        kernel_size=KERNEL_SIZE, stride=STRIDE)
    out = jax.block_until_ready(out)

    ref = feat_avg_pool_ref(x, w_mat, b_mat,
                            kernel_size=KERNEL_SIZE, stride=STRIDE)
    assert out.shape == (B, HIDDEN, (T - KERNEL_SIZE) // STRIDE + 1)
    assert jnp.allclose(out, ref, atol=1e-5, rtol=1e-5), "mismatch vs reference"

    print("KERNEL_OK")
</pallas_src>

<mosaic_0001>
module attributes {stable_mosaic.version = 11 : i64} {
  func.func @_featpool_kernel(%arg0: i32, %arg1: memref<32x4xf32, #tpu.memory_space<vmem>>, %arg2: memref<4x32xf32, #tpu.memory_space<vmem>>, %arg3: memref<1x32xf32, #tpu.memory_space<vmem>>, %arg4: memref<64x8xf32, #tpu.memory_space<vmem>>) attributes {dimension_semantics = [#tpu.dimension_semantics<parallel>], iteration_bounds = array<i64: 1>, scalar_prefetch = 0 : i64, scratch_operands = 0 : i64, tpu.core_type = #tpu.core_type<tc>, window_params = [{transform_indices = @transform_0, window_bounds = array<i64: 32, 4>}, {pipeline_mode = #tpu.pipeline_mode<synchronous>, transform_indices = @transform_1, window_bounds = array<i64: 4, 32>}, {pipeline_mode = #tpu.pipeline_mode<synchronous>, transform_indices = @transform_2, window_bounds = array<i64: 1, 32>}, {transform_indices = @transform_3, window_bounds = array<i64: 64, 8>}]} {
    %c0 = arith.constant 0 : index
    %c0_0 = arith.constant 0 : index
    %0 = vector.load %arg1[%c0, %c0_0] : memref<32x4xf32, #tpu.memory_space<vmem>>, vector<32x4xf32>
    %c0_1 = arith.constant 0 : index
    %c0_2 = arith.constant 0 : index
    %1 = vector.load %arg2[%c0_1, %c0_2] : memref<4x32xf32, #tpu.memory_space<vmem>>, vector<4x32xf32>
    %c0_3 = arith.constant 0 : index
    %c0_4 = arith.constant 0 : index
    %2 = vector.load %arg3[%c0_3, %c0_4] : memref<1x32xf32, #tpu.memory_space<vmem>>, vector<1x32xf32>
    %3 = vector.extract_strided_slice %0 {offsets = [0, 0], sizes = [32, 1], strides = [1, 1]} : vector<32x4xf32> to vector<32x1xf32>
    %4 = vector.extract_strided_slice %1 {offsets = [0, 0], sizes = [1, 32], strides = [1, 1]} : vector<4x32xf32> to vector<1x32xf32>
    %5 = vector.broadcast %3 : vector<32x1xf32> to vector<32x32xf32>
    %6 = vector.broadcast %4 : vector<1x32xf32> to vector<32x32xf32>
    %7 = arith.mulf %5, %6 : vector<32x32xf32>
    %8 = vector.extract_strided_slice %0 {offsets = [0, 1], sizes = [32, 1], strides = [1, 1]} : vector<32x4xf32> to vector<32x1xf32>
    %9 = vector.extract_strided_slice %1 {offsets = [1, 0], sizes = [1, 32], strides = [1, 1]} : vector<4x32xf32> to vector<1x32xf32>
    %10 = vector.broadcast %8 : vector<32x1xf32> to vector<32x32xf32>
    %11 = vector.broadcast %9 : vector<1x32xf32> to vector<32x32xf32>
    %12 = arith.mulf %10, %11 : vector<32x32xf32>
    %13 = arith.addf %7, %12 : vector<32x32xf32>
    %14 = vector.extract_strided_slice %0 {offsets = [0, 2], sizes = [32, 1], strides = [1, 1]} : vector<32x4xf32> to vector<32x1xf32>
    %15 = vector.extract_strided_slice %1 {offsets = [2, 0], sizes = [1, 32], strides = [1, 1]} : vector<4x32xf32> to vector<1x32xf32>
    %16 = vector.broadcast %14 : vector<32x1xf32> to vector<32x32xf32>
    %17 = vector.broadcast %15 : vector<1x32xf32> to vector<32x32xf32>
    %18 = arith.mulf %16, %17 : vector<32x32xf32>
    %19 = arith.addf %13, %18 : vector<32x32xf32>
    %20 = vector.extract_strided_slice %0 {offsets = [0, 3], sizes = [32, 1], strides = [1, 1]} : vector<32x4xf32> to vector<32x1xf32>
    %21 = vector.extract_strided_slice %1 {offsets = [3, 0], sizes = [1, 32], strides = [1, 1]} : vector<4x32xf32> to vector<1x32xf32>
    %22 = vector.broadcast %20 : vector<32x1xf32> to vector<32x32xf32>
    %23 = vector.broadcast %21 : vector<1x32xf32> to vector<32x32xf32>
    %24 = arith.mulf %22, %23 : vector<32x32xf32>
    %25 = arith.addf %19, %24 : vector<32x32xf32>
    %26 = vector.broadcast %2 : vector<1x32xf32> to vector<32x32xf32>
    %27 = arith.addf %25, %26 : vector<32x32xf32>
    %cst = arith.constant 0.000000e+00 : f32
    %28 = vector.broadcast %cst : f32 to vector<32x32xf32>
    %29 = arith.maximumf %27, %28 : vector<32x32xf32>
    %30 = vector.shape_cast %29 : vector<32x32xf32> to vector<16x2x32xf32>
    %31 = vector.extract_strided_slice %30 {offsets = [0, 0, 0], sizes = [16, 1, 32], strides = [1, 1, 1]} : vector<16x2x32xf32> to vector<16x1x32xf32>
    %32 = vector.shape_cast %31 : vector<16x1x32xf32> to vector<16x32xf32>
    %33 = vector.extract_strided_slice %30 {offsets = [0, 1, 0], sizes = [16, 1, 32], strides = [1, 1, 1]} : vector<16x2x32xf32> to vector<16x1x32xf32>
    %34 = vector.shape_cast %33 : vector<16x1x32xf32> to vector<16x32xf32>
    %35 = arith.addf %32, %34 : vector<16x32xf32>
    %cst_5 = arith.constant 5.000000e-01 : f32
    %36 = vector.broadcast %cst_5 : f32 to vector<16x32xf32>
    %37 = arith.mulf %35, %36 : vector<16x32xf32>
    %38 = tpu.transpose %37, [1, 0] : vector<16x32xf32> -> vector<32x16xf32>
    %39 = vector.extract_strided_slice %38 {offsets = [0, 0], sizes = [32, 8], strides = [1, 1]} : vector<32x16xf32> to vector<32x8xf32>
    %40 = vector.extract_strided_slice %38 {offsets = [0, 8], sizes = [32, 8], strides = [1, 1]} : vector<32x16xf32> to vector<32x8xf32>
    %41 = tpu.concatenate %39, %40 in 0 : vector<32x8xf32>, vector<32x8xf32> -> vector<64x8xf32>
    %c0_6 = arith.constant 0 : index
    %c0_7 = arith.constant 0 : index
    %42 = vector.load %arg4[%c0_6, %c0_7] : memref<64x8xf32, #tpu.memory_space<vmem>>, vector<64x8xf32>
    tpu.vector_store %arg4[%c0_6, %c0_7], %41 {strides = array<i32>} : memref<64x8xf32, #tpu.memory_space<vmem>>, vector<64x8xf32>,
    return
  }
  func.func @transform_0(%arg0: i32) -> (i32, i32) {
    %c0_i32 = arith.constant 0 : i32
    %c0_i32_0 = arith.constant 0 : i32
    return %arg0, %c0_i32 : i32, i32
  }
  func.func @transform_1(%arg0: i32) -> (i32, i32) {
    %c0_i32 = arith.constant 0 : i32
    %c0_i32_0 = arith.constant 0 : i32
    %c0_i32_1 = arith.constant 0 : i32
    return %c0_i32, %c0_i32_0 : i32, i32
  }
  func.func @transform_2(%arg0: i32) -> (i32, i32) {
    %c0_i32 = arith.constant 0 : i32
    %c0_i32_0 = arith.constant 0 : i32
    %c0_i32_1 = arith.constant 0 : i32
    return %c0_i32, %c0_i32_0 : i32, i32
  }
  func.func @transform_3(%arg0: i32) -> (i32, i32) {
    %c0_i32 = arith.constant 0 : i32
    %c0_i32_0 = arith.constant 0 : i32
    return %arg0, %c0_i32 : i32, i32
  }
}

</mosaic_0001>

<llo_original>
// kernel: tpu_custom_call.1
$region0: #{tpu_custom_call.1}
  #allocation0 [shape = 'u32[]', space=smem, size = 0x4, offset = 0x4, fixed_abs, tag = 'smem constant byte address 0x4 - core index']
  #allocation1 [shape = 'u32[72,128]{1,0:T(1,128)}', space=vmem, size = 0x9000, scoped, tag = 'internal scratch']
  %s0 = inlined_call_operand.vmem [shape: f32[32,4], index: 0, kind: input, shape index: {}]
  %s1 = inlined_call_operand.vmem [shape: f32[4,32], index: 1, kind: input, shape index: {}]
  %s2 = inlined_call_operand.vmem [shape: f32[1,32], index: 2, kind: input, shape index: {}]
  %s3 = inlined_call_operand.vmem [shape: f32[64,8], index: 3, kind: output, shape index: {}]
  %s4 = sld [smem:[#allocation0]]
  $region22: #{tpu_custom_call.1} parent=0
    _
  %s6 = ssub.s32 1, %s4
  %s7 = scalar_select 0, %s6, %s4
  // Predicated region
  $region2: #{tpu_custom_call.1} parent=0 // pred_check
    _
  $region3: #{tpu_custom_call.1} parent=0 // pred_check_branch
    %9 = sbr.rel (0) target = $region5
  $region4: #{tpu_custom_call.1} parent=0 // pred_region
    _
  $region5: #{tpu_custom_call.1} parent=0 // pred_fallthru
    _
  // Predicated region
  $region6: #{tpu_custom_call.1} parent=0 // pred_check
    _
  $region7: #{tpu_custom_call.1} parent=0 // pred_check_branch
    %11 = sbr.rel (0) target = $region9
  $region8: #{tpu_custom_call.1} parent=0 // pred_region
    _
  $region9: #{tpu_custom_call.1} parent=0 // pred_fallthru
    _
  // Predicated region
  $region10: #{tpu_custom_call.1} parent=0 // pred_check
    _
  $region11: #{tpu_custom_call.1} parent=0 // pred_check_branch
    %13 = sbr.rel (0) target = $region13
  $region12: #{tpu_custom_call.1} parent=0 // pred_region
    _
  $region13: #{tpu_custom_call.1} parent=0 // pred_fallthru
    _
  %v14 = vld [vmem:[%s0] sm:$0xff]
  %v15 = vld [vmem:[%s0 + $0x8] sm:$0xff]
  %v16 = vld [vmem:[%s0 + $0x10] sm:$0xff]
  %v17 = vld [vmem:[%s0 + $0x18] sm:$0xff]
  %v18 = vld [vmem:[%s1] sm:$0xf]
  %v19 = vld [vmem:[%s2] sm:$0x1]
  %21 = vset.pattern.permute.xlu0 0
  %22 = vperm.xlu0 %21, %v14
  %v23 = vpop.permute.xlu0 %22
  %26 = vset.pattern.permute.xlu0 0
  %27 = vperm.xlu0 %26, %v15
  %v28 = vpop.permute.xlu0 %27
  %31 = vset.pattern.permute.xlu0 0
  %32 = vperm.xlu0 %31, %v16
  %v33 = vpop.permute.xlu0 %32
  %36 = vset.pattern.permute.xlu0 0
  %37 = vperm.xlu0 %36, %v17
  %v38 = vpop.permute.xlu0 %37
  %v40 = vperm.slane %v18, 0
  %v41 = vmul.f32 %v23, %v40
  %v42 = vmul.f32 %v28, %v40
  %v43 = vmul.f32 %v33, %v40
  %v44 = vmul.f32 %v38, %v40
  %45 = vset.pattern.permute.xlu0 1
  %46 = vperm.xlu0 %45, %v14
  %v47 = vpop.permute.xlu0 %46
  %49 = vset.pattern.permute.xlu0 1
  %50 = vperm.xlu0 %49, %v15
  %v51 = vpop.permute.xlu0 %50
  %53 = vset.pattern.permute.xlu0 1
  %54 = vperm.xlu0 %53, %v16
  %v55 = vpop.permute.xlu0 %54
  %57 = vset.pattern.permute.xlu0 1
  %58 = vperm.xlu0 %57, %v17
  %v59 = vpop.permute.xlu0 %58
  %v61 = vperm.slane %v18, 1
  %v62 = vmul.f32 %v47, %v61
  %v63 = vmul.f32 %v51, %v61
  %v64 = vmul.f32 %v55, %v61
  %v65 = vmul.f32 %v59, %v61
  %v66 = vadd.f32 %v41, %v62
  %v67 = vadd.f32 %v42, %v63
  %v68 = vadd.f32 %v43, %v64
  %v69 = vadd.f32 %v44, %v65
  %70 = vset.pattern.permute.xlu0 2
  %71 = vperm.xlu0 %70, %v14
  %v72 = vpop.permute.xlu0 %71
  %74 = vset.pattern.permute.xlu0 2
  %75 = vperm.xlu0 %74, %v15
  %v76 = vpop.permute.xlu0 %75
  %78 = vset.pattern.permute.xlu0 2
  %79 = vperm.xlu0 %78, %v16
  %v80 = vpop.permute.xlu0 %79
  %82 = vset.pattern.permute.xlu0 2
  %83 = vperm.xlu0 %82, %v17
  %v84 = vpop.permute.xlu0 %83
  %v86 = vperm.slane %v18, 2
  %v87 = vmul.f32 %v72, %v86
  %v88 = vmul.f32 %v76, %v86
  %v89 = vmul.f32 %v80, %v86
  %v90 = vmul.f32 %v84, %v86
  %v91 = vadd.f32 %v66, %v87
  %v92 = vadd.f32 %v67, %v88
  %v93 = vadd.f32 %v68, %v89
  %v94 = vadd.f32 %v69, %v90
  %95 = vset.pattern.permute.xlu0 3
  %96 = vperm.xlu0 %95, %v14
  %v97 = vpop.permute.xlu0 %96
  %99 = vset.pattern.permute.xlu0 3
  %100 = vperm.xlu0 %99, %v15
  %v101 = vpop.permute.xlu0 %100
  %103 = vset.pattern.permute.xlu0 3
  %104 = vperm.xlu0 %103, %v16
  %v105 = vpop.permute.xlu0 %104
  %107 = vset.pattern.permute.xlu0 3
  %108 = vperm.xlu0 %107, %v17
  %v109 = vpop.permute.xlu0 %108
  %v111 = vperm.slane %v18, 3
  %v112 = vmul.f32 %v97, %v111
  %v113 = vmul.f32 %v101, %v111
  %v114 = vmul.f32 %v105, %v111
  %v115 = vmul.f32 %v109, %v111
  %v116 = vadd.f32 %v91, %v112
  %v117 = vadd.f32 %v92, %v113
  %v118 = vadd.f32 %v93, %v114
  %v119 = vadd.f32 %v94, %v115
  %v121 = vperm.slane %v19, 0
  %v123 = vadd.f32 %v116, %v121
  %v124 = vadd.f32 %v117, %v121
  %v125 = vadd.f32 %v118, %v121
  %v126 = vadd.f32 %v119, %v121
  %v127 = vmax.f32 %v123, 0.0
  %v128 = vmax.f32 %v124, 0.0
  %v129 = vmax.f32 %v125, 0.0
  %v130 = vmax.f32 %v126, 0.0
  %v135 = vrot.slane %v127, 2
  %v136 = vrot.slane %v127, 4
  %v137 = vrot.slane %v127, 6
  %v138 = vrot.slane %v128, 2
  %v139 = vrot.slane %v128, 4
  %v140 = vrot.slane %v128, 6
  %v141 = vrot.slane %v129, 2
  %v142 = vrot.slane %v129, 4
  %v143 = vrot.slane %v129, 6
  %v144 = vrot.slane %v130, 2
  %v145 = vrot.slane %v130, 4
  %v146 = vrot.slane %v130, 6
  %v159 = vrot.slane %v127, 7
  %v160 = vrot.slane %v159, 2
  %v161 = vrot.slane %v135, 7
  %v162 = vrot.slane %v161, 2
  %v163 = vrot.slane %v136, 7
  %v164 = vrot.slane %v163, 2
  %v165 = vrot.slane %v137, 7
  %v166 = vrot.slane %v165, 2
  %v167 = vrot.slane %v128, 7
  %v168 = vrot.slane %v167, 2
  %v169 = vrot.slane %v138, 7
  %v170 = vrot.slane %v169, 2
  %v171 = vrot.slane %v139, 7
  %v172 = vrot.slane %v171, 2
  %v173 = vrot.slane %v140, 7
  %v174 = vrot.slane %v173, 2
  %v175 = vrot.slane %v129, 7
  %v176 = vrot.slane %v175, 2
  %v177 = vrot.slane %v141, 7
  %v178 = vrot.slane %v177, 2
  %v179 = vrot.slane %v142, 7
  %v180 = vrot.slane %v179, 2
  %v181 = vrot.slane %v143, 7
  %v182 = vrot.slane %v181, 2
  %v183 = vrot.slane %v130, 7
  %v184 = vrot.slane %v183, 2
  %v185 = vrot.slane %v144, 7
  %v186 = vrot.slane %v185, 2
  %v187 = vrot.slane %v145, 7
  %v188 = vrot.slane %v187, 2
  %v189 = vrot.slane %v146, 7
  %v190 = vrot.slane %v189, 2
  %v207 = vadd.f32 %v127, %v160
  %v208 = vadd.f32 %v135, %v162
  %v209 = vadd.f32 %v136, %v164
  %v210 = vadd.f32 %v137, %v166
  %v211 = vadd.f32 %v128, %v168
  %v212 = vadd.f32 %v138, %v170
  %v213 = vadd.f32 %v139, %v172
  %v214 = vadd.f32 %v140, %v174
  %v215 = vadd.f32 %v129, %v176
  %v216 = vadd.f32 %v141, %v178
  %v217 = vadd.f32 %v142, %v180
  %v218 = vadd.f32 %v143, %v182
  %v219 = vadd.f32 %v130, %v184
  %v220 = vadd.f32 %v144, %v186
  %v221 = vadd.f32 %v145, %v188
  %v222 = vadd.f32 %v146, %v190
  %v223 = vmul.f32 %v207, 0.5
  %v224 = vmul.f32 %v208, 0.5
  %v225 = vmul.f32 %v209, 0.5
  %v226 = vmul.f32 %v210, 0.5
  %v227 = vmul.f32 %v211, 0.5
  %v228 = vmul.f32 %v212, 0.5
  %v229 = vmul.f32 %v213, 0.5
  %v230 = vmul.f32 %v214, 0.5
  %v231 = vmul.f32 %v215, 0.5
  %v232 = vmul.f32 %v216, 0.5
  %v233 = vmul.f32 %v217, 0.5
  %v234 = vmul.f32 %v218, 0.5
  %v235 = vmul.f32 %v219, 0.5
  %v236 = vmul.f32 %v220, 0.5
  %v237 = vmul.f32 %v221, 0.5
  %v238 = vmul.f32 %v222, 0.5
  %v255 = vperm.slane %v223, 0
  %v256 = vperm.slane %v224, 0
  %v257 = vperm.slane %v225, 0
  %v258 = vperm.slane %v226, 0
  %v259 = vperm.slane %v227, 0
  %v260 = vperm.slane %v228, 0
  %v261 = vperm.slane %v229, 0
  %v262 = vperm.slane %v230, 0
  %v263 = vperm.slane %v231, 0
  %v264 = vperm.slane %v232, 0
  %v265 = vperm.slane %v233, 0
  %v266 = vperm.slane %v234, 0
  %v267 = vperm.slane %v235, 0
  %v268 = vperm.slane %v236, 0
  %v269 = vperm.slane %v237, 0
  %v270 = vperm.slane %v238, 0
  %vm271 = vcmask 1041409
  %v272 = vsel %vm271, %v256, %v255
  %vm273 = vcmask 1042434
  %v274 = vsel %vm273, %v257, %v272
  %vm275 = vcmask 1043459
  %v276 = vsel %vm275, %v258, %v274
  %vm277 = vcmask 1044484
  %v278 = vsel %vm277, %v259, %v276
  %vm279 = vcmask 1045509
  %v280 = vsel %vm279, %v260, %v278
  %vm281 = vcmask 1046534
  %v282 = vsel %vm281, %v261, %v280
  %vm283 = vcmask 1047559
  %v284 = vsel %vm283, %v262, %v282
  %v285 = vsel %vm271, %v264, %v263
  %v286 = vsel %vm273, %v265, %v285
  %v287 = vsel %vm275, %v266, %v286
  %v288 = vsel %vm277, %v267, %v287
  %v289 = vsel %vm279, %v268, %v288
  %v290 = vsel %vm281, %v269, %v289
  %v291 = vsel %vm283, %v270, %v290
  %294 = vxpose.xlu0.b32.start [1/16] %v284, 128
  %295 = vxpose.xlu0.b32.cont [2/16] %v291, 128
  %296 = vxpose.xlu0.b32.cont [3/16] 0.0, 128
  %297 = vxpose.xlu0.b32.cont [4/16] 0.0, 128
  %298 = vxpose.xlu0.b32.cont [5/16] 0.0, 128
  %299 = vxpose.xlu0.b32.cont [6/16] 0.0, 128
  %300 = vxpose.xlu0.b32.cont [7/16] 0.0, 128
  %301 = vxpose.xlu0.b32.cont [8/16] 0.0, 128
  %302 = vxpose.xlu0.b32.cont [9/16] 0.0, 128
  %303 = vxpose.xlu0.b32.cont [10/16] 0.0, 128
  %304 = vxpose.xlu0.b32.cont [11/16] 0.0, 128
  %305 = vxpose.xlu0.b32.cont [12/16] 0.0, 128
  %306 = vxpose.xlu0.b32.cont [13/16] 0.0, 128
  %307 = vxpose.xlu0.b32.cont [14/16] 0.0, 128
  %308 = vxpose.xlu0.b32.cont [15/16] 0.0, 128
  %309 = vxpose.xlu0.b32.end [16/16] 0.0, 128
  %v310 = vpop.trf.xlu0
  %v311 = vpop.trf.xlu0
  %v312 = vpop.trf.xlu0
  %v313 = vpop.trf.xlu0
  %v314 = vpop.trf.xlu0
  %v315 = vpop.trf.xlu0
  %v316 = vpop.trf.xlu0
  %v317 = vpop.trf.xlu0
  %v318 = vpop.trf.xlu0
  %v319 = vpop.trf.xlu0
  %v320 = vpop.trf.xlu0
  %v321 = vpop.trf.xlu0
  %v322 = vpop.trf.xlu0
  %v323 = vpop.trf.xlu0
  %v324 = vpop.trf.xlu0
  %v325 = vpop.trf.xlu0
  %330 = vrot.lane.b32.xlu0 %v310, 120
  %v331 = vpop.permute.xlu0 %330
  %332 = vrot.lane.b32.xlu0 %v311, 120
  %v333 = vpop.permute.xlu0 %332
  %334 = vrot.lane.b32.xlu0 %v312, 120
  %v335 = vpop.permute.xlu0 %334
  %336 = vrot.lane.b32.xlu0 %v313, 120
  %v337 = vpop.permute.xlu0 %336
  %vm342 = vcmask 64512
  %343 = vst.msk [vmem:[%s3] sm:$0xff] %vm342, %v310
  %344 = vst.msk [vmem:[%s3 + $0x8] sm:$0xff] %vm342, %v311
  %345 = vst.msk [vmem:[%s3 + $0x10] sm:$0xff] %vm342, %v312
  %346 = vst.msk [vmem:[%s3 + $0x18] sm:$0xff] %vm342, %v313
  %347 = vst.msk [vmem:[%s3 + $0x20] sm:$0xff] %vm342, %v331
  %348 = vst.msk [vmem:[%s3 + $0x28] sm:$0xff] %vm342, %v333
  %349 = vst.msk [vmem:[%s3 + $0x30] sm:$0xff] %vm342, %v335
  %350 = vst.msk [vmem:[%s3 + $0x38] sm:$0xff] %vm342, %v337
  // Predicated region
  $region14: #{tpu_custom_call.1} parent=0 // pred_check
    _
  $region15: #{tpu_custom_call.1} parent=0 // pred_check_branch
    %352 = sbr.rel (0) target = $region17
  $region16: #{tpu_custom_call.1} parent=0 // pred_region
    _
  $region17: #{tpu_custom_call.1} parent=0 // pred_fallthru
    _
  // Predicated region
  $region18: #{tpu_custom_call.1} parent=0 // pred_check
    _
  $region19: #{tpu_custom_call.1} parent=0 // pred_check_branch
    %354 = sbr.rel (0) target = $region21
  $region20: #{tpu_custom_call.1} parent=0 // pred_region
    _
  $region21: #{tpu_custom_call.1} parent=0 // pred_fallthru
    _

</llo_original>
